<compile_context>
chip_gen: v7x
topology: tpu7x:2x2x1
jax: 0.10.0
libtpu: 0.0.40
codegen_flags: <defaults>
</compile_context>

<pallas_src>
import functools

import jax
import jax.numpy as jnp
from jax.experimental import pallas as pl
from jax.experimental.pallas import tpu as pltpu


def _mean_max_pooler_kernel(x_ref, w_ref, b_ref, o_ref, max_acc, sum_acc,
                            *, hidden, inv_seq_len):
    s = pl.program_id(1)

    # ---- init accumulators on the first seq tile ----
    @pl.when(s == 0)
    def _():
        max_acc[...] = jnp.full_like(max_acc, -jnp.inf)
        sum_acc[...] = jnp.zeros_like(sum_acc)

    # ---- accumulate this (TB, TS, H) tile ----
    x = x_ref[...]                                            # native dtype
    tile_max = jnp.max(x, axis=1).astype(jnp.float32)         # exact in bf16/f32
    tile_sum = jnp.sum(x, axis=1, dtype=jnp.float32)          # f32 accumulation

    max_acc[...] = jnp.maximum(max_acc[...], tile_max)
    sum_acc[...] = sum_acc[...] + tile_sum

    # ---- finalize on the last seq tile: split matmul + bias + tanh ----
    @pl.when(s == pl.num_programs(1) - 1)
    def _():
        max_tok = max_acc[...]                                # (TB, H) f32
        mean_tok = sum_acc[...] * jnp.float32(inv_seq_len)    # (TB, H) f32

        w_max = w_ref[:hidden, :].astype(jnp.float32)         # static slice (H, H)
        w_mean = w_ref[hidden:, :].astype(jnp.float32)        # static slice (H, H)

        out = jnp.dot(max_tok, w_max, preferred_element_type=jnp.float32)
        out = out + jnp.dot(mean_tok, w_mean, preferred_element_type=jnp.float32)
        out = out + b_ref[...].astype(jnp.float32)            # broadcast (1, H)
        o_ref[...] = jnp.tanh(out).astype(o_ref.dtype)


def _pick_batch_tile(batch, cap=8):
    # Largest divisor of `batch` that is a multiple of 8 (sublane friendly),
    # otherwise fall back to the full batch (full-dim blocks are always legal).
    for d in range(min(batch, cap), 0, -1):
        if batch % d == 0 and d % 8 == 0:
            return d
    return batch


def _pick_seq_tile(seq_len, max_rows):
    # Largest divisor of `seq_len` <= max_rows that is a multiple of 8,
    # otherwise fall back to the full seq length.
    cap = max(1, min(seq_len, max_rows))
    for d in range(cap, 0, -1):
        if seq_len % d == 0 and (d % 8 == 0 or d == seq_len):
            return d
    return seq_len


def mean_max_tokens_bert_pooler(hidden_states, weight, bias):
    """hidden_states: (B, S, H); weight: (2H, H) (pre-transposed); bias: (H,)."""
    B, S, H = hidden_states.shape
    assert weight.shape == (2 * H, H)
    bias2d = bias.reshape(1, H)

    x_bytes = hidden_states.dtype.itemsize
    w_bytes = weight.dtype.itemsize

    # Tile selection: keep each x input buffer around <= 2 MiB so the
    # double-buffered pipeline fits the default scoped VMEM on every chip
    # generation (v7x has only 64 MiB physical VMEM).
    TB = _pick_batch_tile(B)
    target_tile_bytes = 2 * 1024 * 1024
    max_seq_rows = max(1, target_tile_bytes // max(1, TB * H * x_bytes))
    TS = _pick_seq_tile(S, max_seq_rows)

    grid = (B // TB, S // TS)

    kernel = functools.partial(
        _mean_max_pooler_kernel, hidden=H, inv_seq_len=1.0 / S)

    cost = pl.CostEstimate(
        flops=2 * B * (2 * H) * H + 2 * B * S * H,
        transcendentals=B * H,
        bytes_accessed=B * S * H * x_bytes + 2 * H * H * w_bytes
        + H * bias.dtype.itemsize + B * H * x_bytes,
    )

    return pl.pallas_call(
        kernel,
        out_shape=jax.ShapeDtypeStruct((B, H), hidden_states.dtype),
        grid_spec=pltpu.PrefetchScalarGridSpec(
            num_scalar_prefetch=0,
            grid=grid,
            in_specs=[
                pl.BlockSpec((TB, TS, H), lambda b, s: (b, s, 0)),
                pl.BlockSpec((2 * H, H), lambda b, s: (0, 0)),
                pl.BlockSpec((1, H), lambda b, s: (0, 0)),
            ],
            out_specs=pl.BlockSpec((TB, H), lambda b, s: (b, 0)),
            scratch_shapes=[
                pltpu.VMEM((TB, H), jnp.float32),   # running max
                pltpu.VMEM((TB, H), jnp.float32),   # running sum
            ],
        ),
        compiler_params=pltpu.CompilerParams(
            dimension_semantics=("parallel", "arbitrary"),
            vmem_limit_bytes=32 * 1024 * 1024,
        ),
        cost_estimate=cost,
    )(hidden_states, weight, bias2d)


def reference(hidden_states, weight, bias):
    max_tok = jnp.max(hidden_states, axis=1)
    mean_tok = jnp.mean(hidden_states, axis=1)
    cat = jnp.concatenate([max_tok, mean_tok], axis=1)
    return jnp.tanh(cat @ weight + bias)


if __name__ == "__main__":
    key = jax.random.PRNGKey(0)
    B, S, H = 2, 8, 32  # batch, seq_len, hidden_size

    k_x, k_w, k_b = jax.random.split(key, 3)
    hidden_states = jax.random.normal(k_x, (B, S, H), dtype=jnp.float32)

    # Deterministic Linear(2H, H) init (uniform(-1/sqrt(fan_in), 1/sqrt(fan_in)))
    fan_in = 2 * H
    bound = 1.0 / jnp.sqrt(jnp.float32(fan_in))
    # weight stored as (2H, H) == transpose of PyTorch's (H, 2H)
    weight = jax.random.uniform(k_w, (2 * H, H), jnp.float32, -bound, bound)
    bias = jax.random.uniform(k_b, (H,), jnp.float32, -bound, bound)

    out = mean_max_tokens_bert_pooler(hidden_states, weight, bias)
    out = jax.block_until_ready(out)

    ref = reference(hidden_states, weight, bias)
    assert out.shape == (B, H)
    assert jnp.allclose(out, ref, atol=1e-5, rtol=1e-5)

    print("KERNEL_OK")
</pallas_src>

<mosaic_0001>
module attributes {stable_mosaic.version = 11 : i64} {
  func.func @_mean_max_pooler_kernel(%arg0: i32, %arg1: i32, %arg2: memref<2x8x32xf32, #tpu.memory_space<vmem>>, %arg3: memref<64x32xf32, #tpu.memory_space<vmem>>, %arg4: memref<1x32xf32, #tpu.memory_space<vmem>>, %arg5: memref<2x32xf32, #tpu.memory_space<vmem>>, %arg6: memref<2x32xf32, #tpu.memory_space<vmem>>, %arg7: memref<2x32xf32, #tpu.memory_space<vmem>>) attributes {dimension_semantics = [#tpu.dimension_semantics<parallel>, #tpu.dimension_semantics<arbitrary>], iteration_bounds = array<i64: 1, 1>, scalar_prefetch = 0 : i64, scratch_operands = 2 : i64, tpu.core_type = #tpu.core_type<tc>, window_params = [{transform_indices = @transform_0, window_bounds = array<i64: 2, 8, 32>}, {pipeline_mode = #tpu.pipeline_mode<synchronous>, transform_indices = @transform_1, window_bounds = array<i64: 64, 32>}, {pipeline_mode = #tpu.pipeline_mode<synchronous>, transform_indices = @transform_2, window_bounds = array<i64: 1, 32>}, {transform_indices = @transform_3, window_bounds = array<i64: 2, 32>}]} {
    %c0_i32 = arith.constant 0 : i32
    %0 = arith.cmpi eq, %arg1, %c0_i32 : i32
    %1 = arith.extui %0 : i1 to i32
    %c0_i32_0 = arith.constant 0 : i32
    %2 = arith.cmpi ne, %1, %c0_i32_0 : i32
    scf.if %2 {
      %cst_14 = arith.constant 0xFF800000 : f32
      %15 = vector.broadcast %cst_14 : f32 to vector<2x32xf32>
      %c0_15 = arith.constant 0 : index
      %c0_16 = arith.constant 0 : index
      %16 = vector.load %arg6[%c0_15, %c0_16] : memref<2x32xf32, #tpu.memory_space<vmem>>, vector<2x32xf32>
      tpu.vector_store %arg6[%c0_15, %c0_16], %15 {strides = array<i32>} : memref<2x32xf32, #tpu.memory_space<vmem>>, vector<2x32xf32>,
      %cst_17 = arith.constant 0.000000e+00 : f32
      %17 = vector.broadcast %cst_17 : f32 to vector<2x32xf32>
      %c0_18 = arith.constant 0 : index
      %c0_19 = arith.constant 0 : index
      %18 = vector.load %arg7[%c0_18, %c0_19] : memref<2x32xf32, #tpu.memory_space<vmem>>, vector<2x32xf32>
      tpu.vector_store %arg7[%c0_18, %c0_19], %17 {strides = array<i32>} : memref<2x32xf32, #tpu.memory_space<vmem>>, vector<2x32xf32>,
    } else {
    }
    %c0 = arith.constant 0 : index
    %c0_1 = arith.constant 0 : index
    %c0_2 = arith.constant 0 : index
    %3 = vector.load %arg2[%c0, %c0_1, %c0_2] : memref<2x8x32xf32, #tpu.memory_space<vmem>>, vector<2x8x32xf32>
    %cst = arith.constant dense<0xFF800000> : vector<2x32xf32>
    %4 = vector.multi_reduction <maximumf>, %3, %cst [1] : vector<2x8x32xf32> to vector<2x32xf32>
    %cst_3 = arith.constant dense<0.000000e+00> : vector<2x32xf32>
    %5 = vector.multi_reduction <add>, %3, %cst_3 [1] : vector<2x8x32xf32> to vector<2x32xf32>
    %c0_4 = arith.constant 0 : index
    %c0_5 = arith.constant 0 : index
    %6 = vector.load %arg6[%c0_4, %c0_5] : memref<2x32xf32, #tpu.memory_space<vmem>>, vector<2x32xf32>
    %7 = arith.maximumf %6, %4 : vector<2x32xf32>
    %c0_6 = arith.constant 0 : index
    %c0_7 = arith.constant 0 : index
    %8 = vector.load %arg6[%c0_6, %c0_7] : memref<2x32xf32, #tpu.memory_space<vmem>>, vector<2x32xf32>
    tpu.vector_store %arg6[%c0_6, %c0_7], %7 {strides = array<i32>} : memref<2x32xf32, #tpu.memory_space<vmem>>, vector<2x32xf32>,
    %c0_8 = arith.constant 0 : index
    %c0_9 = arith.constant 0 : index
    %9 = vector.load %arg7[%c0_8, %c0_9] : memref<2x32xf32, #tpu.memory_space<vmem>>, vector<2x32xf32>
    %10 = arith.addf %9, %5 : vector<2x32xf32>
    %c0_10 = arith.constant 0 : index
    %c0_11 = arith.constant 0 : index
    %11 = vector.load %arg7[%c0_10, %c0_11] : memref<2x32xf32, #tpu.memory_space<vmem>>, vector<2x32xf32>
    tpu.vector_store %arg7[%c0_10, %c0_11], %10 {strides = array<i32>} : memref<2x32xf32, #tpu.memory_space<vmem>>, vector<2x32xf32>,
    %c0_i32_12 = arith.constant 0 : i32
    %12 = arith.cmpi eq, %arg1, %c0_i32_12 : i32
    %13 = arith.extui %12 : i1 to i32
    %c0_i32_13 = arith.constant 0 : i32
    %14 = arith.cmpi ne, %13, %c0_i32_13 : i32
    scf.if %14 {
      %c0_14 = arith.constant 0 : index
      %c0_15 = arith.constant 0 : index
      %15 = vector.load %arg6[%c0_14, %c0_15] : memref<2x32xf32, #tpu.memory_space<vmem>>, vector<2x32xf32>
      %c0_16 = arith.constant 0 : index
      %c0_17 = arith.constant 0 : index
      %16 = vector.load %arg7[%c0_16, %c0_17] : memref<2x32xf32, #tpu.memory_space<vmem>>, vector<2x32xf32>
      %cst_18 = arith.constant 1.250000e-01 : f32
      %17 = vector.broadcast %cst_18 : f32 to vector<2x32xf32>
      %18 = arith.mulf %16, %17 : vector<2x32xf32>
      %c0_19 = arith.constant 0 : index
      %c0_20 = arith.constant 0 : index
      %19 = vector.load %arg3[%c0_19, %c0_20] : memref<64x32xf32, #tpu.memory_space<vmem>>, vector<32x32xf32>
      %c32 = arith.constant 32 : index
      %c0_21 = arith.constant 0 : index
      %20 = vector.load %arg3[%c32, %c0_21] : memref<64x32xf32, #tpu.memory_space<vmem>>, vector<32x32xf32>
      %cst_22 = arith.constant dense<0.000000e+00> : vector<2x32xf32>
      %21 = tpu.matmul %15, %19, %cst_22 {dimension_numbers = #tpu.dot_dimension_numbers<[1], [0], [0], [1], [0, 0, 1, 1], [], []>} : vector<2x32xf32>, vector<32x32xf32>, vector<2x32xf32> -> vector<2x32xf32>
      %cst_23 = arith.constant dense<0.000000e+00> : vector<2x32xf32>
      %22 = tpu.matmul %18, %20, %cst_23 {dimension_numbers = #tpu.dot_dimension_numbers<[1], [0], [0], [1], [0, 0, 1, 1], [], []>} : vector<2x32xf32>, vector<32x32xf32>, vector<2x32xf32> -> vector<2x32xf32>
      %23 = arith.addf %21, %22 : vector<2x32xf32>
      %c0_24 = arith.constant 0 : index
      %c0_25 = arith.constant 0 : index
      %24 = vector.load %arg4[%c0_24, %c0_25] : memref<1x32xf32, #tpu.memory_space<vmem>>, vector<1x32xf32>
      %25 = vector.broadcast %24 : vector<1x32xf32> to vector<2x32xf32>
      %26 = arith.addf %23, %25 : vector<2x32xf32>
      %27 = math.tanh %26 : vector<2x32xf32>
      %c0_26 = arith.constant 0 : index
      %c0_27 = arith.constant 0 : index
      %28 = vector.load %arg5[%c0_26, %c0_27] : memref<2x32xf32, #tpu.memory_space<vmem>>, vector<2x32xf32>
      tpu.vector_store %arg5[%c0_26, %c0_27], %27 {strides = array<i32>} : memref<2x32xf32, #tpu.memory_space<vmem>>, vector<2x32xf32>,
    } else {
    }
    return
  }
  func.func @transform_0(%arg0: i32, %arg1: i32) -> (i32, i32, i32) {
    %c0_i32 = arith.constant 0 : i32
    %c0_i32_0 = arith.constant 0 : i32
    return %arg0, %arg1, %c0_i32 : i32, i32, i32
  }
  func.func @transform_1(%arg0: i32, %arg1: i32) -> (i32, i32) {
    %c0_i32 = arith.constant 0 : i32
    %c0_i32_0 = arith.constant 0 : i32
    %c0_i32_1 = arith.constant 0 : i32
    return %c0_i32, %c0_i32_0 : i32, i32
  }
  func.func @transform_2(%arg0: i32, %arg1: i32) -> (i32, i32) {
    %c0_i32 = arith.constant 0 : i32
    %c0_i32_0 = arith.constant 0 : i32
    %c0_i32_1 = arith.constant 0 : i32
    return %c0_i32, %c0_i32_0 : i32, i32
  }
  func.func @transform_3(%arg0: i32, %arg1: i32) -> (i32, i32) {
    %c0_i32 = arith.constant 0 : i32
    %c0_i32_0 = arith.constant 0 : i32
    return %arg0, %c0_i32 : i32, i32
  }
}

</mosaic_0001>

<llo_original>
// kernel: tpu_custom_call.1
$region0: #{tpu_custom_call.1}
  #allocation0 [shape = 'u32[]', space=smem, size = 0x4, offset = 0x4, fixed_abs, tag = 'smem constant byte address 0x4 - core index']
  #allocation1 [shape = 'u32[144,128]{1,0:T(1,128)}', space=vmem, size = 0x12000, scoped, tag = 'internal scratch']
  #allocation2 [shape = 'f32[2,32]{1,0:T(2,128)}', space=vmem, size = 0x400, scoped, tag = 'scratch operand']
  #allocation3 [shape = 'f32[2,32]{1,0:T(2,128)}', space=vmem, size = 0x400, scoped, tag = 'scratch operand']
  %s0 = inlined_call_operand.vmem [shape: f32[2,8,32], index: 0, kind: input, shape index: {}]
  %s1 = inlined_call_operand.vmem [shape: f32[64,32], index: 1, kind: input, shape index: {}]
  %s2 = inlined_call_operand.vmem [shape: f32[1,32], index: 2, kind: input, shape index: {}]
  %s3 = inlined_call_operand.hbm [shape: f32[2,32], index: 3, kind: output, shape index: {}]
  %s4 = sld [smem:[#allocation0]]
  $region30: #{tpu_custom_call.1} parent=0
    _
  %s6 = ssub.s32 1, %s4
  %s7 = scalar_select 0, %s6, %s4
  $region1: #{tpu_custom_call.1} parent=0
    #allocation4 [shape = 'u8[1024]{0}', space=vmem, size = 0x400, scoped, tag = 'output window, operand 0, single buffered']
    #allocation5 [shape = 's32[1]{0}', space=sflag, size = 0x4, scoped, tag = 'scoped memory for tpu_custom_call.1']
    %8 = vsyncpa [#allocation5], 0
    // Predicated region
    $region2: #{tpu_custom_call.1} parent=1 // pred_check
      _
    $region3: #{tpu_custom_call.1} parent=1 // pred_check_branch
      %10 = sbr.rel (0) target = $region5
    $region4: #{tpu_custom_call.1} parent=1 // pred_region
      _
    $region5: #{tpu_custom_call.1} parent=1 // pred_fallthru
      _
    // Predicated region
    $region6: #{tpu_custom_call.1} parent=1 // pred_check
      _
    $region7: #{tpu_custom_call.1} parent=1 // pred_check_branch
      %12 = sbr.rel (0) target = $region9
    $region8: #{tpu_custom_call.1} parent=1 // pred_region
      _
    $region9: #{tpu_custom_call.1} parent=1 // pred_fallthru
      _
    // Predicated region
    $region10: #{tpu_custom_call.1} parent=1 // pred_check
      _
    $region11: #{tpu_custom_call.1} parent=1 // pred_check_branch
      %14 = sbr.rel (0) target = $region13
    $region12: #{tpu_custom_call.1} parent=1 // pred_region
      _
    $region13: #{tpu_custom_call.1} parent=1 // pred_fallthru
      _
    %p15 = scmp.eq.s32.totalorder 0, 0
    // Predicated region
    $region14: #{tpu_custom_call.1} parent=1 // pred_check
      %p16 = pneg %p15
    $region15: #{tpu_custom_call.1} parent=1 // pred_check_branch
      %18 = sbr.rel (%p16) target = $region17
    $region16: #{tpu_custom_call.1} parent=1 // pred_region
      %vm19 = vcmask 254976
      %20 = vst.msk [vmem:[#allocation2] sm:$0x3] %vm19, -inf
      %21 = vst.msk [vmem:[#allocation3] sm:$0x3] %vm19, 0.0
    $region17: #{tpu_custom_call.1} parent=1 // pred_fallthru
      _
    %v22 = vld [vmem:[%s0] sm:$0xff]
    %v23 = vld [vmem:[%s0 + $0x8] sm:$0xff]
    %vm24 = vcmask 261120
    %v25 = vsel %vm24, %v22, -inf
    %v26 = vrot.slane %v25, 4
    %v27 = vmax.f32 %v25, %v26
    %v28 = vrot.slane %v27, 2
    %v29 = vmax.f32 %v27, %v28
    %v30 = vrot.slane %v29, 1
    %v31 = vmax.f32 %v29, %v30
    %v32 = vsel %vm24, %v23, -inf
    %v33 = vrot.slane %v32, 4
    %v34 = vmax.f32 %v32, %v33
    %v35 = vrot.slane %v34, 2
    %v36 = vmax.f32 %v34, %v35
    %v37 = vrot.slane %v36, 1
    %v38 = vmax.f32 %v36, %v37
    %v39 = vsel %vm24, %v22, 0.0
    %v40 = vrot.slane %v39, 4
    %v41 = vadd.f32 %v39, %v40
    %v42 = vrot.slane %v41, 2
    %v43 = vadd.f32 %v41, %v42
    %v44 = vrot.slane %v43, 1
    %v45 = vadd.f32 %v43, %v44
    %v46 = vsel %vm24, %v23, 0.0
    %v47 = vrot.slane %v46, 4
    %v48 = vadd.f32 %v46, %v47
    %v49 = vrot.slane %v48, 2
    %v50 = vadd.f32 %v48, %v49
    %v51 = vrot.slane %v50, 1
    %v52 = vadd.f32 %v50, %v51
    %v53 = vld [vmem:[#allocation2] sm:$0x3]
    %vm56 = vcmask 1041409
    %v57 = vsel %vm56, %v38, %v31
    %v59 = vmax.f32 %v53, %v57
    %vm60 = vcmask 254976
    %61 = vst.msk [vmem:[#allocation2] sm:$0x3] %vm60, %v59
    %v62 = vld [vmem:[#allocation3] sm:$0x3]
    %v65 = vsel %vm56, %v52, %v45
    %v67 = vadd.f32 %v62, %v65
    %68 = vst.msk [vmem:[#allocation3] sm:$0x3] %vm60, %v67
    // Predicated region
    $region18: #{tpu_custom_call.1} parent=1 // pred_check
      %p69 = pneg %p15
    $region19: #{tpu_custom_call.1} parent=1 // pred_check_branch
      %71 = sbr.rel (%p69) target = $region21
    $region20: #{tpu_custom_call.1} parent=1 // pred_region
      %v72 = vld [vmem:[#allocation2] sm:$0x3]
      %v73 = vld [vmem:[#allocation3] sm:$0x3]
      %v74 = vmul.f32 %v73, 0.125
      %v75 = vld [vmem:[%s1] sm:$0xff]
      %v76 = vld [vmem:[%s1 + $0x8] sm:$0xff]
      %v77 = vld [vmem:[%s1 + $0x10] sm:$0xff]
      %v78 = vld [vmem:[%s1 + $0x18] sm:$0xff]
      %v79 = vld [vmem:[%s1 + $0x20] sm:$0xff]
      %v80 = vld [vmem:[%s1 + $0x28] sm:$0xff]
      %v81 = vld [vmem:[%s1 + $0x30] sm:$0xff]
      %v82 = vld [vmem:[%s1 + $0x38] sm:$0xff]
      %v84 = vsel %vm24, %v74, 0
      %86 = vmatprep.subr.mxu0 0.0
      %87 = vmatpush1.msra.mxu0 %v79
      %88 = vmatprep.subr.mxu0 0.0
      %89 = vmatpush1.msra.mxu0 %v80
      %90 = vmatprep.subr.mxu0 0.0
      %91 = vmatpush1.msra.mxu0 %v81
      %92 = vmatprep.subr.mxu0 0.0
      %93 = vmatpush1.msra.mxu0 %v82
      %94 = vmatprep.subr.mxu0 0.0
      %95 = vmatpush1.msra.mxu0 0.0
      %96 = vmatprep.subr.mxu0 0.0
      %97 = vmatpush1.msra.mxu0 0.0
      %98 = vmatprep.subr.mxu0 0.0
      %99 = vmatpush1.msra.mxu0 0.0
      %100 = vmatprep.subr.mxu0 0.0
      %101 = vmatpush1.msra.mxu0 0.0
      %102 = vmatprep.subr.mxu0 0.0
      %103 = vmatpush1.msra.mxu0 0.0
      %104 = vmatprep.subr.mxu0 0.0
      %105 = vmatpush1.msra.mxu0 0.0
      %106 = vmatprep.subr.mxu0 0.0
      %107 = vmatpush1.msra.mxu0 0.0
      %108 = vmatprep.subr.mxu0 0.0
      %109 = vmatpush1.msra.mxu0 0.0
      %110 = vmatprep.subr.mxu0 0.0
      %111 = vmatpush1.msra.mxu0 0.0
      %112 = vmatprep.subr.mxu0 0.0
      %113 = vmatpush1.msra.mxu0 0.0
      %114 = vmatprep.subr.mxu0 0.0
      %115 = vmatpush1.msra.mxu0 0.0
      %116 = vmatprep.subr.mxu0 0.0
      %117 = vmatpush1.msra.mxu0 0.0
      %118 = vmatprep.subr.mxu0 0.0
      %119 = vmatpush1.msra.mxu0 0.0
      %120 = vmatprep.subr.mxu0 0.0
      %121 = vmatpush1.msra.mxu0 0.0
      %122 = vmatprep.subr.mxu0 0.0
      %123 = vmatpush1.msra.mxu0 0.0
      %124 = vmatprep.subr.mxu0 0.0
      %125 = vmatpush1.msra.mxu0 0.0
      %126 = vmatprep.subr.mxu0 0.0
      %127 = vmatpush1.msra.mxu0 0.0
      %128 = vmatprep.subr.mxu0 0.0
      %129 = vmatpush1.msra.mxu0 0.0
      %130 = vmatprep.subr.mxu0 0.0
      %131 = vmatpush1.msra.mxu0 0.0
      %132 = vmatprep.subr.mxu0 0.0
      %133 = vmatpush1.msra.mxu0 0.0
      %134 = vmatprep.subr.mxu0 0.0
      %135 = vmatpush1.msra.mxu0 0.0
      %136 = vmatprep.subr.mxu0 0.0
      %137 = vmatpush1.msra.mxu0 0.0
      %138 = vmatprep.subr.mxu0 0.0
      %139 = vmatpush1.msra.mxu0 0.0
      %140 = vmatprep.subr.mxu0 0.0
      %141 = vmatpush1.msra.mxu0 0.0
      %142 = vmatprep.subr.mxu0 0.0
      %143 = vmatpush1.msra.mxu0 0.0
      %144 = vmatprep.subr.mxu0 0.0
      %145 = vmatpush1.msra.mxu0 0.0
      %146 = vmatprep.subr.mxu0 0.0
      %147 = vmatpush1.msra.mxu0 0.0
      %148 = vmatprep.subr.mxu0 0.0
      %149 = vmatpush1.msra.mxu0 0.0
      %150 = vmatprep.mubr.f32.mxu0 0.0
      %151 = vmatmul.mubr.f32.gmra.mrb[0].mxu0 %v84
      %v152 = vpop.f32.mrb[0].mxu0
      %v153 = vadd.f32 0.0, %v152
      %v154 = vpop.f32.mrb[0].mxu0
      %155 = vdwg.mxu0
      %v157 = vsel %vm24, %v72, 0
      %159 = vmatprep.subr.mxu0 0.0
      %160 = vmatpush1.msra.mxu0 %v75
      %161 = vmatprep.subr.mxu0 0.0
      %162 = vmatpush1.msra.mxu0 %v76
      %163 = vmatprep.subr.mxu0 0.0
      %164 = vmatpush1.msra.mxu0 %v77
      %165 = vmatprep.subr.mxu0 0.0
      %166 = vmatpush1.msra.mxu0 %v78
      %167 = vmatprep.subr.mxu0 0.0
      %168 = vmatpush1.msra.mxu0 0.0
      %169 = vmatprep.subr.mxu0 0.0
      %170 = vmatpush1.msra.mxu0 0.0
      %171 = vmatprep.subr.mxu0 0.0
      %172 = vmatpush1.msra.mxu0 0.0
      %173 = vmatprep.subr.mxu0 0.0
      %174 = vmatpush1.msra.mxu0 0.0
      %175 = vmatprep.subr.mxu0 0.0
      %176 = vmatpush1.msra.mxu0 0.0
      %177 = vmatprep.subr.mxu0 0.0
      %178 = vmatpush1.msra.mxu0 0.0
      %179 = vmatprep.subr.mxu0 0.0
      %180 = vmatpush1.msra.mxu0 0.0
      %181 = vmatprep.subr.mxu0 0.0
      %182 = vmatpush1.msra.mxu0 0.0
      %183 = vmatprep.subr.mxu0 0.0
      %184 = vmatpush1.msra.mxu0 0.0
      %185 = vmatprep.subr.mxu0 0.0
      %186 = vmatpush1.msra.mxu0 0.0
      %187 = vmatprep.subr.mxu0 0.0
      %188 = vmatpush1.msra.mxu0 0.0
      %189 = vmatprep.subr.mxu0 0.0
      %190 = vmatpush1.msra.mxu0 0.0
      %191 = vmatprep.subr.mxu0 0.0
      %192 = vmatpush1.msra.mxu0 0.0
      %193 = vmatprep.subr.mxu0 0.0
      %194 = vmatpush1.msra.mxu0 0.0
      %195 = vmatprep.subr.mxu0 0.0
      %196 = vmatpush1.msra.mxu0 0.0
      %197 = vmatprep.subr.mxu0 0.0
      %198 = vmatpush1.msra.mxu0 0.0
      %199 = vmatprep.subr.mxu0 0.0
      %200 = vmatpush1.msra.mxu0 0.0
      %201 = vmatprep.subr.mxu0 0.0
      %202 = vmatpush1.msra.mxu0 0.0
      %203 = vmatprep.subr.mxu0 0.0
      %204 = vmatpush1.msra.mxu0 0.0
      %205 = vmatprep.subr.mxu0 0.0
      %206 = vmatpush1.msra.mxu0 0.0
      %207 = vmatprep.subr.mxu0 0.0
      %208 = vmatpush1.msra.mxu0 0.0
      %209 = vmatprep.subr.mxu0 0.0
      %210 = vmatpush1.msra.mxu0 0.0
      %211 = vmatprep.subr.mxu0 0.0
      %212 = vmatpush1.msra.mxu0 0.0
      %213 = vmatprep.subr.mxu0 0.0
      %214 = vmatpush1.msra.mxu0 0.0
      %215 = vmatprep.subr.mxu0 0.0
      %216 = vmatpush1.msra.mxu0 0.0
      %217 = vmatprep.subr.mxu0 0.0
      %218 = vmatpush1.msra.mxu0 0.0
      %219 = vmatprep.subr.mxu0 0.0
      %220 = vmatpush1.msra.mxu0 0.0
      %221 = vmatprep.subr.mxu0 0.0
      %222 = vmatpush1.msra.mxu0 0.0
      %223 = vmatprep.mubr.f32.mxu0 0.0
      %224 = vmatmul.mubr.f32.gmra.mrb[0].mxu0 %v157
      %v225 = vpop.f32.mrb[0].mxu0
      %v226 = vadd.f32 %v153, %v225
      %v227 = vpop.f32.mrb[0].mxu0
      %228 = vdwg.mxu0
      %v229 = vld [vmem:[%s2] sm:$0x1]
      %v231 = vlaneseq
      %v232 = vshrl.u32 %v231, 7
      %v233 = vsub.s32 0, %v232
      %v234 = vrot.slane %v229, %v233
      %v236 = vadd.f32 %v226, %v234
      %v237 = vtanh.pop %v236
      %238 = vst.msk [vmem:[#allocation4] sm:$0x3] %vm60, %v237
    $region21: #{tpu_custom_call.1} parent=1 // pred_fallthru
      _
    // Predicated region
    $region22: #{tpu_custom_call.1} parent=1 // pred_check
      _
    $region23: #{tpu_custom_call.1} parent=1 // pred_check_branch
      %240 = sbr.rel (0) target = $region25
    $region24: #{tpu_custom_call.1} parent=1 // pred_region
      %s242 = ssub.s32 32, 32
      %243 = vsyncadd [#allocation5], %s242
      %s245 = sshll.u32 [#allocation4], 4
      %s246 = int_to_ptr.vmem [resolvable:$true] %s245
      %248 = dma.vmem_to_hbm [thread:$0]  %s246, 32, %s3, [#allocation5]
    $region25: #{tpu_custom_call.1} parent=1 // pred_fallthru
      _
    // Predicated region
    $region26: #{tpu_custom_call.1} parent=1 // pred_check
      _
    $region27: #{tpu_custom_call.1} parent=1 // pred_check_branch
      %250 = sbr.rel (0) target = $region29
    $region28: #{tpu_custom_call.1} parent=1 // pred_region
      %251 = dma.done [#allocation5], 32
    $region29: #{tpu_custom_call.1} parent=1 // pred_fallthru
      _
    %252 = vsyncpa [#allocation5], 1

</llo_original>
